<compile_context>
chip_gen: v6e
topology: v6e:2x2x1
jax: 0.10.0
libtpu: 0.0.40
codegen_flags: <defaults>
</compile_context>

<pallas_src>
import jax
import jax.numpy as jnp
from jax.experimental import pallas as pl
from jax.experimental.pallas import tpu as pltpu


def _disc_kernel_uncond(x_ref, w1_ref, b1_ref, w2_ref, b2_ref, out_ref):
    x = x_ref[...]                                                     # [TM, F]
    # l1: Linear(F -> H)  (single MXU matmul of the kernel)
    h = jnp.dot(x, w1_ref[...], preferred_element_type=jnp.float32) + b1_ref[...]
    # leaky_relu(., 0.1): max(h, 0.1*h)  (mul + max on the VPU)
    feats = jnp.maximum(h, 0.1 * h)                                    # [TM, H]
    # l2 fused as a VPU mul + XLU lane-reduce against the [1, H] weight row.
    d = jnp.sum(feats * w2_ref[...], axis=1, keepdims=True) + b2_ref[0, 0]
    out_ref[...] = d.astype(out_ref.dtype)


def _disc_kernel_cond(x_ref, w1_ref, b1_ref, w2_ref, b2_ref, wy_ref, out_ref):
    x = x_ref[...]                                                     # [TM, F]
    h = jnp.dot(x, w1_ref[...], preferred_element_type=jnp.float32) + b1_ref[...]
    feats = jnp.maximum(h, 0.1 * h)                                    # [TM, H]
    # Fuse l2 projection and the projection-discriminator term into ONE
    # multiply + lane-reduce:  d = b2 + sum(feats * (w2 + w_y), -1)
    proj = w2_ref[...] + wy_ref[...]                                   # [TM, H]
    d = jnp.sum(feats * proj, axis=1, keepdims=True) + b2_ref[0, 0]
    out_ref[...] = d.astype(out_ref.dtype)


def tiny_discriminator_forward(x, params, y=None, *, max_batch_tile=1024):
    """JAX wrapper mirroring TinyDiscriminator.forward.

    x: [B, n_features] float32
    params: dict with 'w1' [H, F], 'b1' [H], 'w2' [1, H], 'b2' [1],
            optional 'emb' [n_classes, H]
    y: optional int32 [B]
    """
    B, F = x.shape
    H = params["w1"].shape[0]

    w1_t = jnp.asarray(params["w1"]).T                  # [F, H]
    b1 = jnp.asarray(params["b1"]).reshape(1, H)        # [1, H]
    w2_row = jnp.asarray(params["w2"]).reshape(1, H)    # [1, H]  (lane-dense)
    b2 = jnp.asarray(params["b2"]).reshape(1, 1)        # [1, 1]  -> SMEM scalar

    # Batch tile: whole batch if small, else a multiple-of-8 tile with weights
    # kept VMEM-resident across grid steps (constant index_map).
    tm = B if B <= max_batch_tile else max_batch_tile
    grid = (pl.cdiv(B, tm),)

    vmem = pltpu.MemorySpace.VMEM
    smem = pltpu.MemorySpace.SMEM

    x_spec = pl.BlockSpec((tm, F), lambda i: (i, 0), memory_space=vmem)
    w1_spec = pl.BlockSpec((F, H), lambda i: (0, 0), memory_space=vmem)
    b1_spec = pl.BlockSpec((1, H), lambda i: (0, 0), memory_space=vmem)
    w2_spec = pl.BlockSpec((1, H), lambda i: (0, 0), memory_space=vmem)
    b2_spec = pl.BlockSpec((1, 1), lambda i: (0, 0), memory_space=smem)
    out_spec = pl.BlockSpec((tm, 1), lambda i: (i, 0), memory_space=vmem)

    compiler_params = pltpu.CompilerParams(
        dimension_semantics=("parallel",),  # shards batch tiles across TCs on v7x
    )

    if y is None:
        # Unconditional path: no w_y input at all (no zero [B, H] DMA).
        kernel = _disc_kernel_uncond
        in_specs = [x_spec, w1_spec, b1_spec, w2_spec, b2_spec]
        args = (x, w1_t, b1, w2_row, b2)
    else:
        w_y = jnp.asarray(params["emb"])[y]             # [B, H] gather (glue)
        wy_spec = pl.BlockSpec((tm, H), lambda i: (i, 0), memory_space=vmem)
        kernel = _disc_kernel_cond
        in_specs = [x_spec, w1_spec, b1_spec, w2_spec, b2_spec, wy_spec]
        args = (x, w1_t, b1, w2_row, b2, w_y)

    return pl.pallas_call(
        kernel,
        out_shape=jax.ShapeDtypeStruct((B, 1), jnp.float32),
        grid=grid,
        in_specs=in_specs,
        out_specs=out_spec,
        compiler_params=compiler_params,
    )(*args)


def init_params(key, n_features, d_hidden, n_classes):
    """Deterministic synthetic parameter init (PyTorch-like shapes)."""
    k1, k2, k3, k4, k5 = jax.random.split(key, 5)
    bound1 = 1.0 / (n_features ** 0.5)
    bound2 = 1.0 / (d_hidden ** 0.5)
    params = {
        "w1": jax.random.uniform(k1, (d_hidden, n_features), jnp.float32, -bound1, bound1),
        "b1": jax.random.uniform(k2, (d_hidden,), jnp.float32, -bound1, bound1),
        "w2": jax.random.uniform(k3, (1, d_hidden), jnp.float32, -bound2, bound2),
        "b2": jax.random.uniform(k4, (1,), jnp.float32, -bound2, bound2),
    }
    if n_classes > 1:
        params["emb"] = jax.random.normal(k5, (n_classes, d_hidden), jnp.float32)
    return params


def reference_forward(x, params, y=None):
    h = x @ params["w1"].T + params["b1"]
    feats = jnp.where(h >= 0, h, 0.1 * h)
    d = feats @ params["w2"].T + params["b2"]
    if y is not None:
        w_y = params["emb"][y]
        d = d + jnp.sum(feats * w_y, axis=1, keepdims=True)
    return d


if __name__ == "__main__":
    key = jax.random.PRNGKey(0)

    # --- Small-shape test (B=2, F=16, H=32, 4 classes) ---
    B, n_features, d_hidden, n_classes = 2, 16, 32, 4
    kx, ky, kp, kx2, ky2 = jax.random.split(key, 5)

    x = jax.random.normal(kx, (B, n_features), jnp.float32)
    y = jax.random.randint(ky, (B,), 0, n_classes, jnp.int32)
    params = init_params(kp, n_features, d_hidden, n_classes)

    d_uncond = jax.block_until_ready(tiny_discriminator_forward(x, params, y=None))
    d_cond = jax.block_until_ready(tiny_discriminator_forward(x, params, y=y))

    assert jnp.allclose(d_uncond, reference_forward(x, params, y=None), atol=1e-5, rtol=1e-5)
    assert jnp.allclose(d_cond, reference_forward(x, params, y=y), atol=1e-5, rtol=1e-5)
    assert d_uncond.shape == (B, 1) and d_cond.shape == (B, 1)

    # --- Larger-batch test exercising the batch grid (4 tiles of 128) ---
    B2 = 512
    x2 = jax.random.normal(kx2, (B2, n_features), jnp.float32)
    y2 = jax.random.randint(ky2, (B2,), 0, n_classes, jnp.int32)

    d2_uncond = jax.block_until_ready(
        tiny_discriminator_forward(x2, params, y=None, max_batch_tile=128))
    d2_cond = jax.block_until_ready(
        tiny_discriminator_forward(x2, params, y=y2, max_batch_tile=128))

    assert jnp.allclose(d2_uncond, reference_forward(x2, params, y=None), atol=1e-5, rtol=1e-5)
    assert jnp.allclose(d2_cond, reference_forward(x2, params, y=y2), atol=1e-5, rtol=1e-5)
    assert d2_uncond.shape == (B2, 1) and d2_cond.shape == (B2, 1)

    print("KERNEL_OK")
</pallas_src>

<mosaic_0001>
module attributes {stable_mosaic.version = 11 : i64} {
  func.func @_disc_kernel_uncond(%arg0: i32, %arg1: memref<2x16xf32, #tpu.memory_space<vmem>>, %arg2: memref<16x32xf32, #tpu.memory_space<vmem>>, %arg3: memref<1x32xf32, #tpu.memory_space<vmem>>, %arg4: memref<1x32xf32, #tpu.memory_space<vmem>>, %arg5: memref<1x1xf32, #tpu.memory_space<smem>>, %arg6: memref<2x1xf32, #tpu.memory_space<vmem>>) attributes {dimension_semantics = [#tpu.dimension_semantics<parallel>], iteration_bounds = array<i64: 1>, scalar_prefetch = 0 : i64, scratch_operands = 0 : i64, tpu.core_type = #tpu.core_type<tc>, window_params = [{transform_indices = @transform_0, window_bounds = array<i64: 2, 16>}, {pipeline_mode = #tpu.pipeline_mode<synchronous>, transform_indices = @transform_1, window_bounds = array<i64: 16, 32>}, {pipeline_mode = #tpu.pipeline_mode<synchronous>, transform_indices = @transform_2, window_bounds = array<i64: 1, 32>}, {pipeline_mode = #tpu.pipeline_mode<synchronous>, transform_indices = @transform_3, window_bounds = array<i64: 1, 32>}, {transform_indices = @transform_4, window_bounds = array<i64: 1, 1>}, {transform_indices = @transform_5, window_bounds = array<i64: 2, 1>}]} {
    %c0 = arith.constant 0 : index
    %c0_0 = arith.constant 0 : index
    %0 = vector.load %arg1[%c0, %c0_0] : memref<2x16xf32, #tpu.memory_space<vmem>>, vector<2x16xf32>
    %c0_1 = arith.constant 0 : index
    %c0_2 = arith.constant 0 : index
    %1 = vector.load %arg2[%c0_1, %c0_2] : memref<16x32xf32, #tpu.memory_space<vmem>>, vector<16x32xf32>
    %cst = arith.constant dense<0.000000e+00> : vector<2x32xf32>
    %2 = tpu.matmul %0, %1, %cst {dimension_numbers = #tpu.dot_dimension_numbers<[1], [0], [0], [1], [0, 0, 1, 1], [], []>} : vector<2x16xf32>, vector<16x32xf32>, vector<2x32xf32> -> vector<2x32xf32>
    %c0_3 = arith.constant 0 : index
    %c0_4 = arith.constant 0 : index
    %3 = vector.load %arg3[%c0_3, %c0_4] : memref<1x32xf32, #tpu.memory_space<vmem>>, vector<1x32xf32>
    %4 = vector.broadcast %3 : vector<1x32xf32> to vector<2x32xf32>
    %5 = arith.addf %2, %4 : vector<2x32xf32>
    %cst_5 = arith.constant 1.000000e-01 : f32
    %6 = vector.broadcast %cst_5 : f32 to vector<2x32xf32>
    %7 = arith.mulf %6, %5 : vector<2x32xf32>
    %8 = arith.maximumf %5, %7 : vector<2x32xf32>
    %c0_6 = arith.constant 0 : index
    %c0_7 = arith.constant 0 : index
    %9 = vector.load %arg4[%c0_6, %c0_7] : memref<1x32xf32, #tpu.memory_space<vmem>>, vector<1x32xf32>
    %10 = vector.broadcast %9 : vector<1x32xf32> to vector<2x32xf32>
    %11 = arith.mulf %8, %10 : vector<2x32xf32>
    %cst_8 = arith.constant dense<0.000000e+00> : vector<2xf32>
    %12 = vector.multi_reduction <add>, %11, %cst_8 [1] : vector<2x32xf32> to vector<2xf32>
    %13 = vector.shape_cast %12 : vector<2xf32> to vector<2x1xf32>
    %c0_9 = arith.constant 0 : index
    %c0_10 = arith.constant 0 : index
    %14 = memref.load %arg5[%c0_9, %c0_10] : memref<1x1xf32, #tpu.memory_space<smem>>
    %15 = vector.broadcast %14 : f32 to vector<2x1xf32>
    %16 = arith.addf %13, %15 : vector<2x1xf32>
    %c0_11 = arith.constant 0 : index
    %c0_12 = arith.constant 0 : index
    %17 = vector.load %arg6[%c0_11, %c0_12] : memref<2x1xf32, #tpu.memory_space<vmem>>, vector<2x1xf32>
    tpu.vector_store %arg6[%c0_11, %c0_12], %16 {strides = array<i32>} : memref<2x1xf32, #tpu.memory_space<vmem>>, vector<2x1xf32>,
    return
  }
  func.func @transform_0(%arg0: i32) -> (i32, i32) {
    %c0_i32 = arith.constant 0 : i32
    %c0_i32_0 = arith.constant 0 : i32
    return %arg0, %c0_i32 : i32, i32
  }
  func.func @transform_1(%arg0: i32) -> (i32, i32) {
    %c0_i32 = arith.constant 0 : i32
    %c0_i32_0 = arith.constant 0 : i32
    %c0_i32_1 = arith.constant 0 : i32
    return %c0_i32, %c0_i32_0 : i32, i32
  }
  func.func @transform_2(%arg0: i32) -> (i32, i32) {
    %c0_i32 = arith.constant 0 : i32
    %c0_i32_0 = arith.constant 0 : i32
    %c0_i32_1 = arith.constant 0 : i32
    return %c0_i32, %c0_i32_0 : i32, i32
  }
  func.func @transform_3(%arg0: i32) -> (i32, i32) {
    %c0_i32 = arith.constant 0 : i32
    %c0_i32_0 = arith.constant 0 : i32
    %c0_i32_1 = arith.constant 0 : i32
    return %c0_i32, %c0_i32_0 : i32, i32
  }
  func.func @transform_4(%arg0: i32) -> (i32, i32) {
    %c0_i32 = arith.constant 0 : i32
    %c0_i32_0 = arith.constant 0 : i32
    %c0_i32_1 = arith.constant 0 : i32
    return %c0_i32, %c0_i32_0 : i32, i32
  }
  func.func @transform_5(%arg0: i32) -> (i32, i32) {
    %c0_i32 = arith.constant 0 : i32
    %c0_i32_0 = arith.constant 0 : i32
    return %arg0, %c0_i32 : i32, i32
  }
}

</mosaic_0001>

<llo_original>
// kernel: tpu_custom_call.1
$region0: #{tpu_custom_call.1}
  #allocation0 [shape = 'u32[]', space=smem, size = 0x4, offset = 0x4, fixed_abs, tag = 'smem constant byte address 0x4 - core index']
  #allocation1 [shape = 'u32[144,128]{1,0:T(1,128)}', space=vmem, size = 0x12000, scoped, tag = 'internal scratch']
  #allocation2 [shape = 'f32[1,1]{1,0:T(1,128)S(6)}', space=smem, size = 0x200, scoped, tag = 'scoped memory for tpu_custom_call.1']
  %s0 = inlined_call_operand.vmem [shape: f32[2,16], index: 0, kind: input, shape index: {}]
  %s1 = inlined_call_operand.hbm [shape: f32[16,32], index: 1, kind: input, shape index: {}]
  %s2 = inlined_call_operand.vmem [shape: f32[1,32], index: 2, kind: input, shape index: {}]
  %s3 = inlined_call_operand.vmem [shape: f32[1,32], index: 3, kind: input, shape index: {}]
  %s4 = inlined_call_operand.<no memory space> [shape: f32[1,1], index: 4, kind: input, shape index: {}]
  %s5 = inlined_call_operand.vmem [shape: f32[2,1], index: 5, kind: output, shape index: {}]
  %s6 = sld [smem:[#allocation0]]
  $region34: #{tpu_custom_call.1} parent=0
    _
  %s8 = ssub.s32 1, %s6
  %s9 = scalar_select 0, %s8, %s6
  %10 = sst [smem:[#allocation2]] %s4
  $region1: #{tpu_custom_call.1} parent=0
    #allocation3 [shape = 'u8[8192]{0}', space=vmem, size = 0x2000, scoped, tag = 'input window, operand 1, single buffered']
    #allocation4 [shape = 's32[1]{0}', space=sflag, size = 0x4, scoped, tag = 'scoped memory for tpu_custom_call.1']
    %11 = vsyncpa [#allocation4], 0
    // Predicated region
    $region2: #{tpu_custom_call.1} parent=1 // pred_check
      _
    $region3: #{tpu_custom_call.1} parent=1 // pred_check_branch
      %13 = sbr.rel (0) target = $region5
    $region4: #{tpu_custom_call.1} parent=1 // pred_region
      _
    $region5: #{tpu_custom_call.1} parent=1 // pred_fallthru
      _
    // Predicated region
    $region6: #{tpu_custom_call.1} parent=1 // pred_check
      _
    $region7: #{tpu_custom_call.1} parent=1 // pred_check_branch
      %15 = sbr.rel (0) target = $region9
    $region8: #{tpu_custom_call.1} parent=1 // pred_region
      %s17 = ssub.s32 256, 256
      %18 = vsyncadd [#allocation4], %s17
      %s19 = sshll.u32 [#allocation3], 4
      %s20 = int_to_ptr.vmem [resolvable:$true] %s19
      %25 = dma.hbm_to_vmem [thread:$0]  %s1, 256, %s20, [#allocation4], 128, 128, 8
    $region9: #{tpu_custom_call.1} parent=1 // pred_fallthru
      _
    // Predicated region
    $region10: #{tpu_custom_call.1} parent=1 // pred_check
      _
    $region11: #{tpu_custom_call.1} parent=1 // pred_check_branch
      %27 = sbr.rel (0) target = $region13
    $region12: #{tpu_custom_call.1} parent=1 // pred_region
      _
    $region13: #{tpu_custom_call.1} parent=1 // pred_fallthru
      _
    // Predicated region
    $region14: #{tpu_custom_call.1} parent=1 // pred_check
      _
    $region15: #{tpu_custom_call.1} parent=1 // pred_check_branch
      %29 = sbr.rel (0) target = $region17
    $region16: #{tpu_custom_call.1} parent=1 // pred_region
      _
    $region17: #{tpu_custom_call.1} parent=1 // pred_fallthru
      _
    // Predicated region
    $region18: #{tpu_custom_call.1} parent=1 // pred_check
      _
    $region19: #{tpu_custom_call.1} parent=1 // pred_check_branch
      %31 = sbr.rel (0) target = $region21
    $region20: #{tpu_custom_call.1} parent=1 // pred_region
      _
    $region21: #{tpu_custom_call.1} parent=1 // pred_fallthru
      _
    // Predicated region
    $region22: #{tpu_custom_call.1} parent=1 // pred_check
      _
    $region23: #{tpu_custom_call.1} parent=1 // pred_check_branch
      %33 = sbr.rel (0) target = $region25
    $region24: #{tpu_custom_call.1} parent=1 // pred_region
      %34 = dma.done [#allocation4], 256
    $region25: #{tpu_custom_call.1} parent=1 // pred_fallthru
      _
    %v35 = vld [vmem:[%s0] sm:$0x3]
    %v36 = vld [vmem:[#allocation3] sm:$0xff]
    %v37 = vld [vmem:[#allocation3 + $0x8] sm:$0xff]
    %v38 = vld [vmem:[%s2] sm:$0x1]
    %v40 = vlaneseq
    %v41 = vshrl.u32 %v40, 7
    %v42 = vsub.s32 0, %v41
    %v43 = vrot.slane %v38, %v42
    %vm45 = vcmask 130048
    %v47 = vsel %vm45, %v35, 0
    %49 = vmatprep.subr.mxu0 0.0
    %50 = vmatpush1.msra.mxu0 0.0
    %51 = vmatprep.subr.mxu0 0.0
    %52 = vmatpush1.msra.mxu0 0.0
    %53 = vmatprep.subr.mxu0 0.0
    %54 = vmatpush1.msra.mxu0 0.0
    %55 = vmatprep.subr.mxu0 0.0
    %56 = vmatpush1.msra.mxu0 0.0
    %57 = vmatprep.subr.mxu0 0.0
    %58 = vmatpush1.msra.mxu0 0.0
    %59 = vmatprep.subr.mxu0 0.0
    %60 = vmatpush1.msra.mxu0 0.0
    %61 = vmatprep.subr.mxu0 0.0
    %62 = vmatpush1.msra.mxu0 0.0
    %63 = vmatprep.subr.mxu0 0.0
    %64 = vmatpush1.msra.mxu0 0.0
    %65 = vmatprep.subr.mxu0 0.0
    %66 = vmatpush1.msra.mxu0 0.0
    %67 = vmatprep.subr.mxu0 0.0
    %68 = vmatpush1.msra.mxu0 0.0
    %69 = vmatprep.subr.mxu0 0.0
    %70 = vmatpush1.msra.mxu0 0.0
    %71 = vmatprep.subr.mxu0 0.0
    %72 = vmatpush1.msra.mxu0 0.0
    %73 = vmatprep.subr.mxu0 0.0
    %74 = vmatpush1.msra.mxu0 0.0
    %75 = vmatprep.subr.mxu0 0.0
    %76 = vmatpush1.msra.mxu0 0.0
    %77 = vmatprep.subr.mxu0 0.0
    %78 = vmatpush1.msra.mxu0 %v37
    %79 = vmatprep.subr.mxu0 0.0
    %80 = vmatpush1.msra.mxu0 %v36
    %81 = vmatprep.subr.mxu0 0.0
    %82 = vmatpush2.msra.mxu0 0.0
    %83 = vmatprep.subr.mxu0 0.0
    %84 = vmatpush2.msra.mxu0 0.0
    %85 = vmatprep.subr.mxu0 0.0
    %86 = vmatpush2.msra.mxu0 0.0
    %87 = vmatprep.subr.mxu0 0.0
    %88 = vmatpush2.msra.mxu0 0.0
    %89 = vmatprep.subr.mxu0 0.0
    %90 = vmatpush2.msra.mxu0 0.0
    %91 = vmatprep.subr.mxu0 0.0
    %92 = vmatpush2.msra.mxu0 0.0
    %93 = vmatprep.subr.mxu0 0.0
    %94 = vmatpush2.msra.mxu0 0.0
    %95 = vmatprep.subr.mxu0 0.0
    %96 = vmatpush2.msra.mxu0 0.0
    %97 = vmatprep.subr.mxu0 0.0
    %98 = vmatpush2.msra.mxu0 0.0
    %99 = vmatprep.subr.mxu0 0.0
    %100 = vmatpush2.msra.mxu0 0.0
    %101 = vmatprep.subr.mxu0 0.0
    %102 = vmatpush2.msra.mxu0 0.0
    %103 = vmatprep.subr.mxu0 0.0
    %104 = vmatpush2.msra.mxu0 0.0
    %105 = vmatprep.subr.mxu0 0.0
    %106 = vmatpush2.msra.mxu0 0.0
    %107 = vmatprep.subr.mxu0 0.0
    %108 = vmatpush2.msra.mxu0 0.0
    %109 = vmatprep.subr.mxu0 0.0
    %110 = vmatpush2.msra.mxu0 0.0
    %111 = vmatprep.subr.mxu0 0.0
    %112 = vmatpush2.msra.mxu0 0.0
    %113 = vmatprep.mubr.f32.mxu0 0.0
    %114 = vmatmul.mubr.f32.gmra.mxu0 %v47
    %v115 = vpop.f32.mrf.mxu0
    %v116 = vadd.f32 %v43, %v115
    %v117 = vpop.f32.mrf.mxu0
    %118 = vdwg.mxu0
    %v119 = vmul.f32 %v116, 0.1
    %v120 = vmax.f32 %v116, %v119
    %v121 = vld [vmem:[%s3] sm:$0x1]
    %v123 = vlaneseq
    %v124 = vshrl.u32 %v123, 7
    %v125 = vsub.s32 0, %v124
    %v126 = vrot.slane %v121, %v125
    %v128 = vmul.f32 %v120, %v126
    %vm129 = vcmask 254976
    %v130 = vsel %vm129, %v128, 0.0
    %131 = vadd.xlane.f32.xlu0 %v130
    %v132 = vpop.xlane.xlu0 %131
    %s133 = sld [smem:[#allocation2]]
    %v134 = vstv %s133
    %v135 = vadd.f32 %v132, %v134
    %vm136 = vcmask 1024
    %137 = vst.msk [vmem:[%s5] sm:$0x3] %vm136, %v135
    // Predicated region
    $region26: #{tpu_custom_call.1} parent=1 // pred_check
      _
    $region27: #{tpu_custom_call.1} parent=1 // pred_check_branch
      %139 = sbr.rel (0) target = $region29
    $region28: #{tpu_custom_call.1} parent=1 // pred_region
      _
    $region29: #{tpu_custom_call.1} parent=1 // pred_fallthru
      _
    // Predicated region
    $region30: #{tpu_custom_call.1} parent=1 // pred_check
      _
    $region31: #{tpu_custom_call.1} parent=1 // pred_check_branch
      %141 = sbr.rel (0) target = $region33
    $region32: #{tpu_custom_call.1} parent=1 // pred_region
      _
    $region33: #{tpu_custom_call.1} parent=1 // pred_fallthru
      _
    %142 = vsyncpa [#allocation4], 1

</llo_original>
